<compile_context>
chip_gen: v6e
topology: v6e:2x2x1
jax: 0.10.0
libtpu: 0.0.40
codegen_flags: <defaults>
</compile_context>

<pallas_src>
import jax
import jax.numpy as jnp
from jax.experimental import pallas as pl
from jax.experimental.pallas import tpu as pltpu

_LANES = 128
_SUBLANES = 8


def _face_area_consistency_kernel(o_ref, d_ref, p_ref):
    o = o_ref[...].astype(jnp.float32)          # (block_rows, 128)
    d = d_ref[...].astype(jnp.float32)
    v = o / d + d / o                           # elementwise, VPU/EUP
    # Sublane-axis reduce -> per-lane partial sums. The final cross-lane /
    # cross-chunk combine is a tiny XLA reduce outside the kernel; this keeps
    # output stores lane-dense and every grid step independent ("parallel").
    p_ref[...] = jnp.sum(v, axis=0, keepdims=True).reshape(1, 1, _LANES)


def face_area_consistency(original: jax.Array,
                          deformed: jax.Array,
                          *,
                          max_block_rows: int = 1024) -> jax.Array:
    """Pallas implementation of FaceAreaConsistency.forward.

    original, deformed: same-shaped positive tensors (e.g. (B, F) face areas).
    returns:            scalar float32 = sum(original/deformed + deformed/original)
    """
    assert original.shape == deformed.shape, (original.shape, deformed.shape)
    o = original.reshape(-1).astype(jnp.float32)
    d = deformed.reshape(-1).astype(jnp.float32)
    n = o.shape[0]

    # Tile geometry: (block_rows, 128) f32 tiles, block_rows a multiple of 8.
    rows_needed = pl.cdiv(n, _LANES)
    block_rows = min(max_block_rows, pl.cdiv(rows_needed, _SUBLANES) * _SUBLANES)
    num_chunks = pl.cdiv(rows_needed, block_rows)
    rows_total = num_chunks * block_rows
    n_total = rows_total * _LANES
    num_pad = n_total - n

    # Pad with 1.0 so every padded element contributes exactly 2.0 (subtracted
    # from the final sum below — exact in f32).
    if num_pad:
        o = jnp.pad(o, (0, num_pad), constant_values=1.0)
        d = jnp.pad(d, (0, num_pad), constant_values=1.0)

    o2 = o.reshape(rows_total, _LANES)
    d2 = d.reshape(rows_total, _LANES)

    in_spec = pl.BlockSpec((block_rows, _LANES), lambda i: (i, 0))
    out_spec = pl.BlockSpec((1, 1, _LANES), lambda i: (i, 0, 0))

    partials = pl.pallas_call(
        _face_area_consistency_kernel,
        out_shape=jax.ShapeDtypeStruct((num_chunks, 1, _LANES), jnp.float32),
        grid=(num_chunks,),
        in_specs=[in_spec, in_spec],
        out_specs=out_spec,
        compiler_params=pltpu.CompilerParams(
            dimension_semantics=("parallel",)),
        cost_estimate=pl.CostEstimate(
            flops=3 * n_total,
            transcendentals=0,
            bytes_accessed=8 * n_total + 4 * num_chunks * _LANES),
    )(o2, d2)

    # Tiny glue reduce over (num_chunks, 1, 128) partials + padding correction.
    total = jnp.sum(partials) - 2.0 * num_pad
    return total


if __name__ == "__main__":
    key = jax.random.PRNGKey(0)
    k_o, k_d = jax.random.split(key)

    # Small shapes consistent with the module: per-face areas for a batch of
    # meshes. F is not a multiple of 128 -> exercises the padding path.
    B, F = 2, 777
    original = jax.random.uniform(k_o, (B, F), jnp.float32, 0.5, 2.0)
    deformed = jax.random.uniform(k_d, (B, F), jnp.float32, 0.5, 2.0)

    out = face_area_consistency(original, deformed)
    out = jax.block_until_ready(out)

    # Pure-JAX reference mirroring the torch forward exactly.
    ref = jnp.sum(original / deformed + deformed / original)

    assert out.shape == (), out.shape
    assert out.dtype == jnp.float32, out.dtype
    assert jnp.allclose(out, ref, rtol=1e-5, atol=1e-3), (float(out), float(ref))

    # Force a multi-chunk grid (several parallel tiles) and re-check.
    out2 = face_area_consistency(original, deformed, max_block_rows=8)
    out2 = jax.block_until_ready(out2)
    assert jnp.allclose(out2, ref, rtol=1e-5, atol=1e-3), (float(out2), float(ref))

    print("KERNEL_OK")
</pallas_src>

<mosaic_0001>
module attributes {stable_mosaic.version = 11 : i64} {
  func.func @_face_area_consistency_kernel(%arg0: i32, %arg1: memref<16x128xf32, #tpu.memory_space<vmem>>, %arg2: memref<16x128xf32, #tpu.memory_space<vmem>>, %arg3: memref<1x1x128xf32, #tpu.memory_space<vmem>>) attributes {dimension_semantics = [#tpu.dimension_semantics<parallel>], iteration_bounds = array<i64: 1>, scalar_prefetch = 0 : i64, scratch_operands = 0 : i64, tpu.core_type = #tpu.core_type<tc>, window_params = [{transform_indices = @transform_0, window_bounds = array<i64: 16, 128>}, {transform_indices = @transform_1, window_bounds = array<i64: 16, 128>}, {transform_indices = @transform_2, window_bounds = array<i64: 1, 1, 128>}]} {
    %c0 = arith.constant 0 : index
    %c0_0 = arith.constant 0 : index
    %0 = vector.load %arg1[%c0, %c0_0] : memref<16x128xf32, #tpu.memory_space<vmem>>, vector<16x128xf32>
    %c0_1 = arith.constant 0 : index
    %c0_2 = arith.constant 0 : index
    %1 = vector.load %arg2[%c0_1, %c0_2] : memref<16x128xf32, #tpu.memory_space<vmem>>, vector<16x128xf32>
    %2 = arith.divf %0, %1 : vector<16x128xf32>
    %3 = arith.divf %1, %0 : vector<16x128xf32>
    %4 = arith.addf %2, %3 : vector<16x128xf32>
    %cst = arith.constant dense<0.000000e+00> : vector<128xf32>
    %5 = vector.multi_reduction <add>, %4, %cst [0] : vector<16x128xf32> to vector<128xf32>
    %6 = vector.shape_cast %5 : vector<128xf32> to vector<1x128xf32>
    %7 = vector.shape_cast %6 : vector<1x128xf32> to vector<1x1x128xf32>
    %c0_3 = arith.constant 0 : index
    %c0_4 = arith.constant 0 : index
    %c0_5 = arith.constant 0 : index
    %8 = vector.load %arg3[%c0_3, %c0_4, %c0_5] : memref<1x1x128xf32, #tpu.memory_space<vmem>>, vector<1x1x128xf32>
    tpu.vector_store %arg3[%c0_3, %c0_4, %c0_5], %7 {strides = array<i32>} : memref<1x1x128xf32, #tpu.memory_space<vmem>>, vector<1x1x128xf32>,
    return
  }
  func.func @transform_0(%arg0: i32) -> (i32, i32) {
    %c0_i32 = arith.constant 0 : i32
    %c0_i32_0 = arith.constant 0 : i32
    return %arg0, %c0_i32 : i32, i32
  }
  func.func @transform_1(%arg0: i32) -> (i32, i32) {
    %c0_i32 = arith.constant 0 : i32
    %c0_i32_0 = arith.constant 0 : i32
    return %arg0, %c0_i32 : i32, i32
  }
  func.func @transform_2(%arg0: i32) -> (i32, i32, i32) {
    %c0_i32 = arith.constant 0 : i32
    %c0_i32_0 = arith.constant 0 : i32
    %c0_i32_1 = arith.constant 0 : i32
    return %arg0, %c0_i32, %c0_i32_0 : i32, i32, i32
  }
}

</mosaic_0001>

<llo_original>
// kernel: tpu_custom_call.1
$region0: #{tpu_custom_call.1}
  #allocation0 [shape = 'u32[]', space=smem, size = 0x4, offset = 0x4, fixed_abs, tag = 'smem constant byte address 0x4 - core index']
  #allocation1 [shape = 'u32[144,128]{1,0:T(1,128)}', space=vmem, size = 0x12000, scoped, tag = 'internal scratch']
  %s0 = inlined_call_operand.hbm [shape: f32[16,128], index: 0, kind: input, shape index: {}]
  %s1 = inlined_call_operand.hbm [shape: f32[16,128], index: 1, kind: input, shape index: {}]
  %s2 = inlined_call_operand.hbm [shape: f32[1,1,128], index: 2, kind: output, shape index: {}]
  %s3 = sld [smem:[#allocation0]]
  $region26: #{tpu_custom_call.1} parent=0
    _
  %s5 = ssub.s32 1, %s3
  %s6 = scalar_select 0, %s5, %s3
  $region1: #{tpu_custom_call.1} parent=0
    #allocation2 [shape = 'u8[8192]{0}', space=vmem, size = 0x2000, scoped, tag = 'input window, operand 0, single buffered']
    #allocation3 [shape = 's32[1]{0}', space=sflag, size = 0x4, scoped, tag = 'scoped memory for tpu_custom_call.1']
    #allocation4 [shape = 's32[1]{0}', space=sflag, size = 0x4, scoped, tag = 'scoped memory for tpu_custom_call.1']
    #allocation5 [shape = 'u8[8192]{0}', space=vmem, size = 0x2000, scoped, tag = 'input window, operand 1, single buffered']
    #allocation6 [shape = 's32[1]{0}', space=sflag, size = 0x4, scoped, tag = 'scoped memory for tpu_custom_call.1']
    #allocation7 [shape = 'u8[512]{0}', space=vmem, size = 0x400, scoped, tag = 'output window, operand 0, single buffered']
    %7 = vsyncpa [#allocation3], 0
    %8 = vsyncpa [#allocation6], 0
    %9 = vsyncpa [#allocation4], 0
    // Predicated region
    $region2: #{tpu_custom_call.1} parent=1 // pred_check
      _
    $region3: #{tpu_custom_call.1} parent=1 // pred_check_branch
      %11 = sbr.rel (0) target = $region5
    $region4: #{tpu_custom_call.1} parent=1 // pred_region
      %s13 = ssub.s32 256, 256
      %14 = vsyncadd [#allocation3], %s13
      %s15 = sshll.u32 [#allocation2], 4
      %s16 = int_to_ptr.vmem [resolvable:$true] %s15
      %21 = dma.hbm_to_vmem [thread:$0]  %s0, 256, %s16, [#allocation3], 128, 128, 8
    $region5: #{tpu_custom_call.1} parent=1 // pred_fallthru
      _
    // Predicated region
    $region6: #{tpu_custom_call.1} parent=1 // pred_check
      _
    $region7: #{tpu_custom_call.1} parent=1 // pred_check_branch
      %23 = sbr.rel (0) target = $region9
    $region8: #{tpu_custom_call.1} parent=1 // pred_region
      %s25 = ssub.s32 256, 256
      %26 = vsyncadd [#allocation6], %s25
      %s27 = sshll.u32 [#allocation5], 4
      %s28 = int_to_ptr.vmem [resolvable:$true] %s27
      %33 = dma.hbm_to_vmem [thread:$0]  %s1, 256, %s28, [#allocation6], 128, 128, 8
    $region9: #{tpu_custom_call.1} parent=1 // pred_fallthru
      _
    // Predicated region
    $region10: #{tpu_custom_call.1} parent=1 // pred_check
      _
    $region11: #{tpu_custom_call.1} parent=1 // pred_check_branch
      %35 = sbr.rel (0) target = $region13
    $region12: #{tpu_custom_call.1} parent=1 // pred_region
      %36 = dma.done [#allocation3], 256
    $region13: #{tpu_custom_call.1} parent=1 // pred_fallthru
      _
    // Predicated region
    $region14: #{tpu_custom_call.1} parent=1 // pred_check
      _
    $region15: #{tpu_custom_call.1} parent=1 // pred_check_branch
      %38 = sbr.rel (0) target = $region17
    $region16: #{tpu_custom_call.1} parent=1 // pred_region
      %39 = dma.done [#allocation6], 256
    $region17: #{tpu_custom_call.1} parent=1 // pred_fallthru
      _
    %v40 = vld [vmem:[#allocation2] sm:$0xff]
    %v41 = vld [vmem:[#allocation2 + $0x8] sm:$0xff]
    %v42 = vld [vmem:[#allocation5] sm:$0xff]
    %v43 = vld [vmem:[#allocation5 + $0x8] sm:$0xff]
    %v44 = vrcp.pop %v42
    %v45 = vmul.f32 %v40, %v44
    %v46 = vrcp.pop %v43
    %v47 = vmul.f32 %v41, %v46
    %v48 = vrcp.pop %v40
    %v49 = vmul.f32 %v42, %v48
    %v50 = vrcp.pop %v41
    %v51 = vmul.f32 %v43, %v50
    %v52 = vadd.f32 %v45, %v49
    %v53 = vadd.f32 %v47, %v51
    %v54 = vadd.f32 %v52, %v53
    %v55 = vrot.slane %v54, 4
    %v56 = vadd.f32 %v54, %v55
    %v57 = vrot.slane %v56, 2
    %v58 = vadd.f32 %v56, %v57
    %v59 = vrot.slane %v58, 1
    %v60 = vadd.f32 %v58, %v59
    %61 = vst [vmem:[#allocation7] sm:$0x1] %v60
    // Predicated region
    $region18: #{tpu_custom_call.1} parent=1 // pred_check
      _
    $region19: #{tpu_custom_call.1} parent=1 // pred_check_branch
      %63 = sbr.rel (0) target = $region21
    $region20: #{tpu_custom_call.1} parent=1 // pred_region
      %s65 = ssub.s32 16, 16
      %66 = vsyncadd [#allocation4], %s65
      %s68 = sshll.u32 [#allocation7], 4
      %s69 = int_to_ptr.vmem [resolvable:$true] %s68
      %71 = dma.vmem_to_hbm [thread:$0]  %s69, 16, %s2, [#allocation4]
    $region21: #{tpu_custom_call.1} parent=1 // pred_fallthru
      _
    // Predicated region
    $region22: #{tpu_custom_call.1} parent=1 // pred_check
      _
    $region23: #{tpu_custom_call.1} parent=1 // pred_check_branch
      %73 = sbr.rel (0) target = $region25
    $region24: #{tpu_custom_call.1} parent=1 // pred_region
      %74 = dma.done [#allocation4], 16
    $region25: #{tpu_custom_call.1} parent=1 // pred_fallthru
      _
    %75 = vsyncpa [#allocation3], 1
    %76 = vsyncpa [#allocation6], 1
    %77 = vsyncpa [#allocation4], 1

</llo_original>
